<compile_context>
chip_gen: v7x
topology: tpu7x:2x2x1
jax: 0.10.0
libtpu: 0.0.40
codegen_flags: <defaults>
</compile_context>

<pallas_src>
import functools

import jax
import jax.numpy as jnp
from jax.experimental import pallas as pl
from jax.experimental.pallas import tpu as pltpu


# ---------------------------------------------------------------------------
# One-time parameter preparation (NOT on the per-step path).
#
# slab0  : [s_dim + 1, h_dim]      rows 0..s_dim-1 = W0.T, row s_dim = b0
# heads  : [h_dim + 1, a_dim + 1]  rows 0..h_dim-1 = [Wp.T | Wv.T],
#                                  row  h_dim      = [bp   | bv  ]
# ---------------------------------------------------------------------------
def prepare_params(params):
    W0 = jnp.asarray(params["W0"], jnp.float32)   # [h_dim, s_dim]
    b0 = jnp.asarray(params["b0"], jnp.float32)   # [h_dim]
    Wp = jnp.asarray(params["Wp"], jnp.float32)   # [a_dim, h_dim]
    bp = jnp.asarray(params["bp"], jnp.float32)   # [a_dim]
    Wv = jnp.asarray(params["Wv"], jnp.float32)   # [1, h_dim]
    bv = jnp.asarray(params["bv"], jnp.float32)   # [1]

    h_dim, s_dim = W0.shape
    a_dim = Wp.shape[0]

    slab0 = jnp.concatenate([W0.T, b0.reshape(1, h_dim)], axis=0)       # [s_dim+1, h_dim]
    w_heads = jnp.concatenate([Wp.T, Wv.T], axis=1)                     # [h_dim, a_dim+1]
    b_heads = jnp.concatenate([bp, bv]).reshape(1, a_dim + 1)           # [1, a_dim+1]
    heads = jnp.concatenate([w_heads, b_heads], axis=0)                 # [h_dim+1, a_dim+1]

    return {"slab0": slab0, "heads": heads, "dims": (s_dim, h_dim, a_dim)}


# ---------------------------------------------------------------------------
# Single-state kernel (matches the PyTorch module semantics exactly:
# 1-D state in, softmax over the action vector, scalar value head).
# ---------------------------------------------------------------------------
def _localnet_kernel(state_ref, slab0_ref, heads_ref, out_ref, *,
                     s_dim, h_dim, a_dim):
    slab0 = slab0_ref[...]                       # [s_dim+1, h_dim]

    # h1 = relu(b0 + sum_k state[k] * W0[k, :])  -- VPU broadcast-MAC,
    # statically unrolled over the tiny s_dim (no MXU for a 1x4x32 product).
    h1 = slab0[s_dim:s_dim + 1, :]               # bias row, [1, h_dim]
    for k in range(s_dim):
        h1 = h1 + state_ref[k] * slab0[k:k + 1, :]
    h1 = jnp.maximum(h1, 0.0)

    # Fused policy+value head: one [1, h_dim] x [h_dim, a_dim+1] matmul.
    heads = heads_ref[...]                       # [h_dim+1, a_dim+1]
    wh = heads[0:h_dim, :]
    bh = heads[h_dim:h_dim + 1, :]
    z = jnp.dot(h1, wh, preferred_element_type=jnp.float32) + bh   # [1, a_dim+1]

    logits = z[:, 0:a_dim]
    value = z[:, a_dim:a_dim + 1]

    m = jnp.max(logits, axis=-1, keepdims=True)
    e = jnp.exp(logits - m)
    denom = jnp.sum(e, axis=-1, keepdims=True)
    # exact reciprocal keeps the 1e-5 tolerance; approx=True would use the EUP
    p = e * pl.reciprocal(denom, approx=False)

    out_ref[:, 0:a_dim] = p
    out_ref[:, a_dim:a_dim + 1] = value


def localnet_forward(state, prep):
    """state: [s_dim] f32 (unbatched, like the PyTorch module). prep: prepare_params(...)."""
    s_dim, h_dim, a_dim = prep["dims"]

    out = pl.pallas_call(
        functools.partial(_localnet_kernel, s_dim=s_dim, h_dim=h_dim, a_dim=a_dim),
        out_shape=jax.ShapeDtypeStruct((1, a_dim + 1), jnp.float32),
        in_specs=[
            pl.BlockSpec(memory_space=pltpu.MemorySpace.SMEM),   # state scalars
            pl.BlockSpec(memory_space=pltpu.MemorySpace.VMEM),   # slab0
            pl.BlockSpec(memory_space=pltpu.MemorySpace.VMEM),   # heads slab
        ],
        out_specs=pl.BlockSpec(memory_space=pltpu.MemorySpace.VMEM),
    )(state.astype(jnp.float32), prep["slab0"], prep["heads"])

    return out[0, :a_dim], out[0, a_dim:]        # policy [a_dim], value [1]


# ---------------------------------------------------------------------------
# Batched kernel: many env states per call so the MXU has real rows to chew on.
# Softmax is taken over the action axis per row (intended batched semantics).
# ---------------------------------------------------------------------------
def _localnet_batched_kernel(state_ref, slab0_ref, heads_ref, out_ref, *,
                             s_dim, h_dim, a_dim):
    slab0 = slab0_ref[...]
    w0 = slab0[0:s_dim, :]                       # [s_dim, h_dim]
    b0 = slab0[s_dim:s_dim + 1, :]               # [1, h_dim]

    h1 = jnp.dot(state_ref[...], w0, preferred_element_type=jnp.float32) + b0
    h1 = jnp.maximum(h1, 0.0)                    # [TB, h_dim]

    heads = heads_ref[...]
    wh = heads[0:h_dim, :]
    bh = heads[h_dim:h_dim + 1, :]
    z = jnp.dot(h1, wh, preferred_element_type=jnp.float32) + bh   # [TB, a_dim+1]

    logits = z[:, 0:a_dim]
    value = z[:, a_dim:a_dim + 1]

    m = jnp.max(logits, axis=-1, keepdims=True)
    e = jnp.exp(logits - m)
    p = e * pl.reciprocal(jnp.sum(e, axis=-1, keepdims=True), approx=False)

    out_ref[:, 0:a_dim] = p
    out_ref[:, a_dim:a_dim + 1] = value


def localnet_forward_batched(states, prep, *, block_b=128):
    """states: [B, s_dim] f32, B a multiple of block_b."""
    s_dim, h_dim, a_dim = prep["dims"]
    B = states.shape[0]
    assert B % block_b == 0, "B must be a multiple of block_b"

    out = pl.pallas_call(
        functools.partial(_localnet_batched_kernel,
                          s_dim=s_dim, h_dim=h_dim, a_dim=a_dim),
        out_shape=jax.ShapeDtypeStruct((B, a_dim + 1), jnp.float32),
        grid=(pl.cdiv(B, block_b),),
        in_specs=[
            pl.BlockSpec((block_b, s_dim), lambda i: (i, 0)),
            pl.BlockSpec((s_dim + 1, h_dim), lambda i: (0, 0)),
            pl.BlockSpec((h_dim + 1, a_dim + 1), lambda i: (0, 0)),
        ],
        out_specs=pl.BlockSpec((block_b, a_dim + 1), lambda i: (i, 0)),
        compiler_params=pltpu.CompilerParams(
            dimension_semantics=("parallel",)),     # shards batch tiles on v7x
    )(states.astype(jnp.float32), prep["slab0"], prep["heads"])

    return out[:, :a_dim], out[:, a_dim:]        # policy [B, a_dim], value [B, 1]


# ---------------------------------------------------------------------------
# Init + pure-JAX reference
# ---------------------------------------------------------------------------
def init_params(key, s_dim, h_dim, a_dim):
    """Deterministic PyTorch-style init: U(-1/sqrt(fan_in), 1/sqrt(fan_in))."""
    ks = jax.random.split(key, 6)

    def lin(kw, kb, fan_in, fan_out):
        bound = 1.0 / jnp.sqrt(fan_in)
        W = jax.random.uniform(kw, (fan_out, fan_in), jnp.float32, -bound, bound)
        b = jax.random.uniform(kb, (fan_out,), jnp.float32, -bound, bound)
        return W, b

    W0, b0 = lin(ks[0], ks[1], s_dim, h_dim)
    Wp, bp = lin(ks[2], ks[3], h_dim, a_dim)
    Wv, bv = lin(ks[4], ks[5], h_dim, 1)
    return {"W0": W0, "b0": b0, "Wp": Wp, "bp": bp, "Wv": Wv, "bv": bv}


def _reference(state, params):
    h1 = jnp.maximum(state @ params["W0"].T + params["b0"], 0.0)
    logits = h1 @ params["Wp"].T + params["bp"]
    out_p = jax.nn.softmax(logits, axis=-1)       # == softmax(dim=0) on 1-D input
    out_v = h1 @ params["Wv"].T + params["bv"]
    return out_p, out_v


if __name__ == "__main__":
    # Small shapes consistent with CartPole A3C: s_dim=4, h_dim=32, a_dim=2.
    s_dim, h_dim, a_dim = 4, 32, 2

    key = jax.random.PRNGKey(0)
    k_state, k_params, k_batch = jax.random.split(key, 3)
    state = jax.random.normal(k_state, (s_dim,), jnp.float32)
    params = init_params(k_params, s_dim, h_dim, a_dim)

    prep = prepare_params(params)                 # one-time, off the step path

    # --- single-state path (matches the PyTorch module) ---
    out_p, out_v = localnet_forward(state, prep)
    jax.block_until_ready((out_p, out_v))

    ref_p, ref_v = _reference(state, params)
    assert out_p.shape == (a_dim,) and out_v.shape == (1,)
    assert jnp.allclose(out_p, ref_p, atol=1e-5, rtol=1e-5)
    assert jnp.allclose(out_v, ref_v, atol=1e-5, rtol=1e-5)
    assert jnp.allclose(jnp.sum(out_p), 1.0, atol=1e-5)

    # --- batched path (many env states per call) ---
    B = 256
    states = jax.random.normal(k_batch, (B, s_dim), jnp.float32)
    bp_out, bv_out = localnet_forward_batched(states, prep, block_b=128)
    jax.block_until_ready((bp_out, bv_out))

    ref_bp, ref_bv = jax.vmap(lambda s: _reference(s, params))(states)
    assert bp_out.shape == (B, a_dim) and bv_out.shape == (B, 1)
    assert jnp.allclose(bp_out, ref_bp, atol=1e-5, rtol=1e-5)
    assert jnp.allclose(bv_out, ref_bv, atol=1e-5, rtol=1e-5)

    print("KERNEL_OK")
</pallas_src>

<mosaic_0001>
module attributes {stable_mosaic.version = 11 : i64} {
  func.func @_localnet_kernel(%arg0: memref<4xf32, #tpu.memory_space<smem>>, %arg1: memref<5x32xf32, #tpu.memory_space<vmem>>, %arg2: memref<33x3xf32, #tpu.memory_space<vmem>>, %arg3: memref<1x3xf32, #tpu.memory_space<vmem>>) attributes {dimension_semantics = [], scalar_prefetch = 0 : i64, scratch_operands = 0 : i64, tpu.core_type = #tpu.core_type<tc>} {
    %c0 = arith.constant 0 : index
    %c0_0 = arith.constant 0 : index
    %0 = vector.load %arg1[%c0, %c0_0] : memref<5x32xf32, #tpu.memory_space<vmem>>, vector<5x32xf32>
    %1 = vector.extract_strided_slice %0 {offsets = [4, 0], sizes = [1, 32], strides = [1, 1]} : vector<5x32xf32> to vector<1x32xf32>
    %c0_1 = arith.constant 0 : index
    %2 = memref.load %arg0[%c0_1] : memref<4xf32, #tpu.memory_space<smem>>
    %3 = vector.extract_strided_slice %0 {offsets = [0, 0], sizes = [1, 32], strides = [1, 1]} : vector<5x32xf32> to vector<1x32xf32>
    %4 = vector.broadcast %2 : f32 to vector<1x32xf32>
    %5 = arith.mulf %4, %3 : vector<1x32xf32>
    %6 = arith.addf %1, %5 : vector<1x32xf32>
    %c1 = arith.constant 1 : index
    %7 = memref.load %arg0[%c1] : memref<4xf32, #tpu.memory_space<smem>>
    %8 = vector.extract_strided_slice %0 {offsets = [1, 0], sizes = [1, 32], strides = [1, 1]} : vector<5x32xf32> to vector<1x32xf32>
    %9 = vector.broadcast %7 : f32 to vector<1x32xf32>
    %10 = arith.mulf %9, %8 : vector<1x32xf32>
    %11 = arith.addf %6, %10 : vector<1x32xf32>
    %c2 = arith.constant 2 : index
    %12 = memref.load %arg0[%c2] : memref<4xf32, #tpu.memory_space<smem>>
    %13 = vector.extract_strided_slice %0 {offsets = [2, 0], sizes = [1, 32], strides = [1, 1]} : vector<5x32xf32> to vector<1x32xf32>
    %14 = vector.broadcast %12 : f32 to vector<1x32xf32>
    %15 = arith.mulf %14, %13 : vector<1x32xf32>
    %16 = arith.addf %11, %15 : vector<1x32xf32>
    %c3 = arith.constant 3 : index
    %17 = memref.load %arg0[%c3] : memref<4xf32, #tpu.memory_space<smem>>
    %18 = vector.extract_strided_slice %0 {offsets = [3, 0], sizes = [1, 32], strides = [1, 1]} : vector<5x32xf32> to vector<1x32xf32>
    %19 = vector.broadcast %17 : f32 to vector<1x32xf32>
    %20 = arith.mulf %19, %18 : vector<1x32xf32>
    %21 = arith.addf %16, %20 : vector<1x32xf32>
    %cst = arith.constant 0.000000e+00 : f32
    %22 = vector.broadcast %cst : f32 to vector<1x32xf32>
    %23 = arith.maximumf %21, %22 : vector<1x32xf32>
    %c0_2 = arith.constant 0 : index
    %c0_3 = arith.constant 0 : index
    %24 = vector.load %arg2[%c0_2, %c0_3] : memref<33x3xf32, #tpu.memory_space<vmem>>, vector<33x3xf32>
    %25 = vector.extract_strided_slice %24 {offsets = [0, 0], sizes = [32, 3], strides = [1, 1]} : vector<33x3xf32> to vector<32x3xf32>
    %26 = vector.extract_strided_slice %24 {offsets = [32, 0], sizes = [1, 3], strides = [1, 1]} : vector<33x3xf32> to vector<1x3xf32>
    %cst_4 = arith.constant dense<0.000000e+00> : vector<1x3xf32>
    %27 = tpu.matmul %23, %25, %cst_4 {dimension_numbers = #tpu.dot_dimension_numbers<[1], [0], [0], [1], [0, 0, 1, 1], [], []>} : vector<1x32xf32>, vector<32x3xf32>, vector<1x3xf32> -> vector<1x3xf32>
    %28 = arith.addf %27, %26 : vector<1x3xf32>
    %29 = vector.extract_strided_slice %28 {offsets = [0, 0], sizes = [1, 2], strides = [1, 1]} : vector<1x3xf32> to vector<1x2xf32>
    %30 = vector.extract_strided_slice %28 {offsets = [0, 2], sizes = [1, 1], strides = [1, 1]} : vector<1x3xf32> to vector<1x1xf32>
    %cst_5 = arith.constant dense<0xFF800000> : vector<1xf32>
    %31 = vector.multi_reduction <maximumf>, %29, %cst_5 [1] : vector<1x2xf32> to vector<1xf32>
    %32 = vector.shape_cast %31 : vector<1xf32> to vector<1x1xf32>
    %33 = vector.broadcast %32 : vector<1x1xf32> to vector<1x2xf32>
    %34 = arith.subf %29, %33 : vector<1x2xf32>
    %35 = math.exp %34 : vector<1x2xf32>
    %cst_6 = arith.constant dense<0.000000e+00> : vector<1xf32>
    %36 = vector.multi_reduction <add>, %35, %cst_6 [1] : vector<1x2xf32> to vector<1xf32>
    %37 = vector.shape_cast %36 : vector<1xf32> to vector<1x1xf32>
    %38 = tpu.reciprocal %37 : vector<1x1xf32> -> vector<1x1xf32>
    %39 = vector.broadcast %38 : vector<1x1xf32> to vector<1x2xf32>
    %40 = arith.mulf %35, %39 : vector<1x2xf32>
    %c0_7 = arith.constant 0 : index
    %c0_8 = arith.constant 0 : index
    %41 = vector.load %arg3[%c0_7, %c0_8] : memref<1x3xf32, #tpu.memory_space<vmem>>, vector<1x2xf32>
    tpu.vector_store %arg3[%c0_7, %c0_8], %40 {strides = array<i32>} : memref<1x3xf32, #tpu.memory_space<vmem>>, vector<1x2xf32>,
    %c0_9 = arith.constant 0 : index
    %c2_10 = arith.constant 2 : index
    %42 = vector.load %arg3[%c0_9, %c2_10] : memref<1x3xf32, #tpu.memory_space<vmem>>, vector<1x1xf32>
    tpu.vector_store %arg3[%c0_9, %c2_10], %30 {strides = array<i32>} : memref<1x3xf32, #tpu.memory_space<vmem>>, vector<1x1xf32>,
    return
  }
}

</mosaic_0001>

<llo_original>
// kernel: tpu_custom_call.1
$region0: #{tpu_custom_call.1}
  #allocation0 [shape = 'u32[]', space=smem, size = 0x4, offset = 0x4, fixed_abs, tag = 'smem constant byte address 0x4 - core index']
  #allocation1 [shape = 'u32[144,128]{1,0:T(1,128)}', space=vmem, size = 0x12000, scoped, tag = 'internal scratch']
  %s0 = inlined_call_operand.vmem [shape: f32[4], index: 0, kind: input, shape index: {}]
  %s1 = inlined_call_operand.vmem [shape: f32[5,32], index: 1, kind: input, shape index: {}]
  %s2 = inlined_call_operand.vmem [shape: f32[33,3], index: 2, kind: input, shape index: {}]
  %s3 = inlined_call_operand.hbm [shape: f32[1,3], index: 3, kind: output, shape index: {}]
  %s4 = sld [smem:[#allocation0]]
  $region26: #{tpu_custom_call.1} parent=0
    _
  %s6 = ssub.s32 1, %s4
  %s7 = scalar_select 0, %s6, %s4
  $region1: #{tpu_custom_call.1} parent=0
    #allocation2 [shape = 'u8[512]{0}', space=smem, size = 0x200, scoped, tag = 'input window, operand 0, single buffered']
    #allocation3 [shape = 's32[1]{0}', space=sflag, size = 0x4, scoped, tag = 'scoped memory for tpu_custom_call.1']
    #allocation4 [shape = 's32[1]{0}', space=sflag, size = 0x4, scoped, tag = 'scoped memory for tpu_custom_call.1']
    #allocation5 [shape = 'u8[512]{0}', space=vmem, size = 0x400, scoped, tag = 'output window, operand 0, single buffered']
    %8 = vsyncpa [#allocation4], 0
    %9 = vsyncpa [#allocation3], 0
    // Predicated region
    $region2: #{tpu_custom_call.1} parent=1 // pred_check
      _
    $region3: #{tpu_custom_call.1} parent=1 // pred_check_branch
      %11 = sbr.rel (0) target = $region5
    $region4: #{tpu_custom_call.1} parent=1 // pred_region
      %s13 = ssub.s32 16, 16
      %14 = vsyncadd [#allocation4], %s13
      %s16 = sshll.u32 %s0, 4
      %s17 = int_to_ptr.vmem [resolvable:$true] %s16
      %19 = dma.vmem_to_smem %s17, 16, [#allocation2], [#allocation4]
    $region5: #{tpu_custom_call.1} parent=1 // pred_fallthru
      _
    // Predicated region
    $region6: #{tpu_custom_call.1} parent=1 // pred_check
      _
    $region7: #{tpu_custom_call.1} parent=1 // pred_check_branch
      %21 = sbr.rel (0) target = $region9
    $region8: #{tpu_custom_call.1} parent=1 // pred_region
      _
    $region9: #{tpu_custom_call.1} parent=1 // pred_fallthru
      _
    // Predicated region
    $region10: #{tpu_custom_call.1} parent=1 // pred_check
      _
    $region11: #{tpu_custom_call.1} parent=1 // pred_check_branch
      %23 = sbr.rel (0) target = $region13
    $region12: #{tpu_custom_call.1} parent=1 // pred_region
      _
    $region13: #{tpu_custom_call.1} parent=1 // pred_fallthru
      _
    // Predicated region
    $region14: #{tpu_custom_call.1} parent=1 // pred_check
      _
    $region15: #{tpu_custom_call.1} parent=1 // pred_check_branch
      %25 = sbr.rel (0) target = $region17
    $region16: #{tpu_custom_call.1} parent=1 // pred_region
      %26 = dma.done [#allocation4], 16
    $region17: #{tpu_custom_call.1} parent=1 // pred_fallthru
      _
    %27 = sfence
    %v28 = vld [vmem:[%s1] sm:$0x1f]
    %s29 = sld [smem:[#allocation2]]
    %v30 = vstv %s29
    %v31 = vmul.f32 %v30, %v28
    %v33 = vrot.slane %v31, 4
    %v35 = vadd.f32 %v28, %v33
    %s36 = sld [smem:[#allocation2 + $0x1]]
    %v37 = vstv %s36
    %v38 = vmul.f32 %v37, %v28
    %v40 = vrot.slane %v38, 5
    %v42 = vadd.f32 %v35, %v40
    %s43 = sld [smem:[#allocation2 + $0x2]]
    %v44 = vstv %s43
    %v45 = vmul.f32 %v44, %v28
    %v47 = vrot.slane %v45, 6
    %v49 = vadd.f32 %v42, %v47
    %s50 = sld [smem:[#allocation2 + $0x3]]
    %v51 = vstv %s50
    %v52 = vmul.f32 %v51, %v28
    %v54 = vrot.slane %v52, 7
    %v56 = vadd.f32 %v49, %v54
    %v57 = vmax.f32 %v56, 0.0
    %v58 = vld [vmem:[%s2] sm:$0xff]
    %v59 = vld [vmem:[%s2 + $0x8] sm:$0xff]
    %v60 = vld [vmem:[%s2 + $0x10] sm:$0xff]
    %v61 = vld [vmem:[%s2 + $0x18] sm:$0xff]
    %v62 = vld [vmem:[%s2 + $0x20] sm:$0x1]
    %v64 = vrot.slane %v57, 4
    %vm65 = vcmask 261120
    %v66 = vsel %vm65, %v64, 0
    %68 = vmatprep.subr.mxu0 0.0
    %69 = vmatpush1.msra.mxu0 %v58
    %70 = vmatprep.subr.mxu0 0.0
    %71 = vmatpush1.msra.mxu0 %v59
    %72 = vmatprep.subr.mxu0 0.0
    %73 = vmatpush1.msra.mxu0 %v60
    %74 = vmatprep.subr.mxu0 0.0
    %75 = vmatpush1.msra.mxu0 %v61
    %76 = vmatprep.subr.mxu0 0.0
    %77 = vmatpush1.msra.mxu0 0.0
    %78 = vmatprep.subr.mxu0 0.0
    %79 = vmatpush1.msra.mxu0 0.0
    %80 = vmatprep.subr.mxu0 0.0
    %81 = vmatpush1.msra.mxu0 0.0
    %82 = vmatprep.subr.mxu0 0.0
    %83 = vmatpush1.msra.mxu0 0.0
    %84 = vmatprep.subr.mxu0 0.0
    %85 = vmatpush1.msra.mxu0 0.0
    %86 = vmatprep.subr.mxu0 0.0
    %87 = vmatpush1.msra.mxu0 0.0
    %88 = vmatprep.subr.mxu0 0.0
    %89 = vmatpush1.msra.mxu0 0.0
    %90 = vmatprep.subr.mxu0 0.0
    %91 = vmatpush1.msra.mxu0 0.0
    %92 = vmatprep.subr.mxu0 0.0
    %93 = vmatpush1.msra.mxu0 0.0
    %94 = vmatprep.subr.mxu0 0.0
    %95 = vmatpush1.msra.mxu0 0.0
    %96 = vmatprep.subr.mxu0 0.0
    %97 = vmatpush1.msra.mxu0 0.0
    %98 = vmatprep.subr.mxu0 0.0
    %99 = vmatpush1.msra.mxu0 0.0
    %100 = vmatprep.subr.mxu0 0.0
    %101 = vmatpush1.msra.mxu0 0.0
    %102 = vmatprep.subr.mxu0 0.0
    %103 = vmatpush1.msra.mxu0 0.0
    %104 = vmatprep.subr.mxu0 0.0
    %105 = vmatpush1.msra.mxu0 0.0
    %106 = vmatprep.subr.mxu0 0.0
    %107 = vmatpush1.msra.mxu0 0.0
    %108 = vmatprep.subr.mxu0 0.0
    %109 = vmatpush1.msra.mxu0 0.0
    %110 = vmatprep.subr.mxu0 0.0
    %111 = vmatpush1.msra.mxu0 0.0
    %112 = vmatprep.subr.mxu0 0.0
    %113 = vmatpush1.msra.mxu0 0.0
    %114 = vmatprep.subr.mxu0 0.0
    %115 = vmatpush1.msra.mxu0 0.0
    %116 = vmatprep.subr.mxu0 0.0
    %117 = vmatpush1.msra.mxu0 0.0
    %118 = vmatprep.subr.mxu0 0.0
    %119 = vmatpush1.msra.mxu0 0.0
    %120 = vmatprep.subr.mxu0 0.0
    %121 = vmatpush1.msra.mxu0 0.0
    %122 = vmatprep.subr.mxu0 0.0
    %123 = vmatpush1.msra.mxu0 0.0
    %124 = vmatprep.subr.mxu0 0.0
    %125 = vmatpush1.msra.mxu0 0.0
    %126 = vmatprep.subr.mxu0 0.0
    %127 = vmatpush1.msra.mxu0 0.0
    %128 = vmatprep.subr.mxu0 0.0
    %129 = vmatpush1.msra.mxu0 0.0
    %130 = vmatprep.subr.mxu0 0.0
    %131 = vmatpush1.msra.mxu0 0.0
    %132 = vmatprep.mubr.f32.mxu0 0.0
    %133 = vmatmul.mubr.f32.gmra.mrb[0].mxu0 %v66
    %v134 = vpop.f32.mrb[0].mxu0
    %v135 = vadd.f32 %v62, %v134
    %v136 = vpop.f32.mrb[0].mxu0
    %137 = vdwg.mxu0
    %vm138 = vcmask 8192
    %v139 = vsel %vm138, %v135, -inf
    %140 = vmax.xlane.f32.xlu0 %v139
    %v141 = vpop.xlane.xlu0 %140
    %v142 = vsub.f32 %v135, %v141
    %v143 = vmul.f32 %v142, 1.442695
    %v144 = vpow.pop %v143
    %v145 = vsel %vm138, %v144, 0.0
    %146 = vadd.xlane.f32.xlu0 %v145
    %v147 = vpop.xlane.xlu0 %146
    %v148 = vrcp.pop %v147
    %v149 = vmul.f32 %v144, %v148
    %150 = vst.msk [vmem:[#allocation5] sm:$0x1] %vm138, %v149
    %vm151 = vcmask 16400
    %152 = vst.msk [vmem:[#allocation5] sm:$0x1] %vm151, %v135
    // Predicated region
    $region18: #{tpu_custom_call.1} parent=1 // pred_check
      _
    $region19: #{tpu_custom_call.1} parent=1 // pred_check_branch
      %154 = sbr.rel (0) target = $region21
    $region20: #{tpu_custom_call.1} parent=1 // pred_region
      %s156 = ssub.s32 16, 16
      %157 = vsyncadd [#allocation3], %s156
      %s159 = sshll.u32 [#allocation5], 4
      %s160 = int_to_ptr.vmem [resolvable:$true] %s159
      %162 = dma.vmem_to_hbm [thread:$0]  %s160, 16, %s3, [#allocation3]
    $region21: #{tpu_custom_call.1} parent=1 // pred_fallthru
      _
    // Predicated region
    $region22: #{tpu_custom_call.1} parent=1 // pred_check
      _
    $region23: #{tpu_custom_call.1} parent=1 // pred_check_branch
      %164 = sbr.rel (0) target = $region25
    $region24: #{tpu_custom_call.1} parent=1 // pred_region
      %165 = dma.done [#allocation3], 16
    $region25: #{tpu_custom_call.1} parent=1 // pred_fallthru
      _
    %166 = vsyncpa [#allocation3], 1
    %167 = vsyncpa [#allocation4], 1

</llo_original>
